<compile_context>
chip_gen: v7x
topology: tpu7x:2x2x1
jax: 0.10.0
libtpu: 0.0.40
codegen_flags: <defaults>
</compile_context>

<pallas_src>
import functools

import jax
import jax.numpy as jnp
from jax.experimental import pallas as pl
from jax.experimental.pallas import tpu as pltpu


def _round_up(v, m):
    return (v + m - 1) // m * m


def _label_smoothing_kernel(x_ref, tgt_ref, out_ref, *,
                            n_rows, confidence, smoothing):
    i = pl.program_id(0)
    tn, c = x_ref.shape

    # Stream native dtype from HBM (bf16 stays bf16 on the wire).
    x_nat = x_ref[...]                                                   # (tn, C)

    # Pass 1: row max in the NATIVE dtype (exact for max; packed bf16 VALU on
    # v6e/v7x, auto-widened by the compiler on v5e).
    m = jnp.max(x_nat, axis=-1, keepdims=True).astype(jnp.float32)       # (tn, 1)

    # Single f32 view of the block, reused by the next two passes.
    xf = x_nat.astype(jnp.float32)                                       # (tn, C)

    # Pass 2: LSE (exp on the EUP, f32 accumulation).
    lse = jnp.log(jnp.sum(jnp.exp(xf - m), axis=-1, keepdims=True))      # (tn, 1)

    # Pass 3: fused gather + mean term as one weighted reduce:
    #   sum_j x_ij * (s/C + conf*[j==t_i]) = conf*x[i,t_i] + (s/C)*sum_j x_ij
    tgt = tgt_ref[...]                                                   # (tn, 1)
    col = jax.lax.broadcasted_iota(jnp.int32, (tn, c), 1)
    w = jnp.where(col == tgt, confidence + smoothing / c, smoothing / c)  # f32
    weighted = jnp.sum(xf * w, axis=-1, keepdims=True)                   # (tn, 1)

    # loss_i = (m + lse) - conf * x[i, t_i] - (s/C) * sum_j x[i, j]
    loss = (m + lse) - weighted                                          # (tn, 1)

    # Mask rows that overhang the (unpadded) batch. A select cannot let
    # garbage / NaN from the overhang propagate into the partial sum.
    row = i * tn + jax.lax.broadcasted_iota(jnp.int32, (tn, 1), 0)
    loss = jnp.where(row < n_rows, loss, 0.0)

    # Lane-dense (1, 8, 128) partial-sum tile per grid step (unmasked store);
    # distinct tiles per step -> safe under "parallel" semantics (v7x 2-TC).
    blk_sum = jnp.sum(loss)
    out_ref[...] = jnp.broadcast_to(blk_sum, out_ref.shape).astype(jnp.float32)


def label_smoothing_loss(x, target, smoothing=0.1, block_rows=None):
    """x: (N, C) logits (any float dtype); target: (N,) int indices -> scalar loss."""
    n, c = x.shape
    confidence = 1.0 - smoothing
    itemsize = jnp.dtype(x.dtype).itemsize

    # VMEM budget (per-TensorCore). Fallback is v7x-conservative (64 MiB).
    try:
        vmem_cap = int(pltpu.get_tpu_info().vmem_capacity_bytes)
    except Exception:
        vmem_cap = 64 * 1024 * 1024

    if block_rows is None:
        budget = int(vmem_cap * 0.4)                 # headroom for regalloc etc.
        # Double-buffered native block + ~4 f32-sized temporaries (cast copy,
        # exp, weights/product, iota).
        per_row = c * (2 * itemsize + 4 * 4)
        block_rows = budget // max(per_row, 1)
    tn = max(8, (min(block_rows, 4096) // 8) * 8)    # multiple of 8 sublanes
    tn = min(tn, _round_up(n, 8))

    grid = pl.cdiv(n, tn)                            # no padding of x: last block overhangs
    tgt2d = target.reshape(n, 1).astype(jnp.int32)

    kernel = functools.partial(
        _label_smoothing_kernel,
        n_rows=n, confidence=confidence, smoothing=smoothing,
    )

    partials = pl.pallas_call(
        kernel,
        out_shape=jax.ShapeDtypeStruct((grid, 8, 128), jnp.float32),
        grid=(grid,),
        in_specs=[
            pl.BlockSpec((tn, c), lambda i: (i, 0)),     # x block (native dtype)
            pl.BlockSpec((tn, 1), lambda i: (i, 0)),     # target block
        ],
        out_specs=pl.BlockSpec((1, 8, 128), lambda i: (i, 0, 0)),
        compiler_params=pltpu.CompilerParams(
            dimension_semantics=("parallel",),           # rows are independent
            vmem_limit_bytes=int(vmem_cap * 0.75),
        ),
    )(x, tgt2d)

    # Combine per-block partials (tiny) and take the batch mean.
    return jnp.sum(partials[:, 0, 0]) / jnp.float32(n)


def _reference(x, target, smoothing=0.1):
    confidence = 1.0 - smoothing
    logprobs = jax.nn.log_softmax(x.astype(jnp.float32), axis=-1)
    nll = -jnp.take_along_axis(logprobs, target[:, None].astype(jnp.int32),
                               axis=-1)[:, 0]
    smooth = -jnp.mean(logprobs, axis=-1)
    return jnp.mean(confidence * nll + smoothing * smooth)


if __name__ == "__main__":
    key = jax.random.PRNGKey(0)
    k1, k2, k3, k4, k5, k6 = jax.random.split(key, 6)

    # 1) f32, lane-dense C, single grid step.
    x1 = jax.random.normal(k1, (16, 128), dtype=jnp.float32)
    t1 = jax.random.randint(k2, (16,), 0, 128, dtype=jnp.int32)
    l1 = label_smoothing_loss(x1, t1)
    jax.block_until_ready(l1)
    assert jnp.allclose(l1, _reference(x1, t1), atol=1e-5, rtol=1e-5), (
        l1, _reference(x1, t1))

    # 2) bf16 input streamed natively, N not a multiple of 8 (overhang + mask,
    #    no wrapper-side padding of x).
    x2 = jax.random.normal(k3, (10, 96), dtype=jnp.bfloat16)
    t2 = jax.random.randint(k4, (10,), 0, 96, dtype=jnp.int32)
    l2 = label_smoothing_loss(x2, t2)
    jax.block_until_ready(l2)
    assert jnp.allclose(l2, _reference(x2, t2), atol=1e-4, rtol=1e-4), (
        l2, _reference(x2, t2))

    # 3) forced multi-step grid with an overhanging last block to exercise the
    #    per-block partial sums and row masking together.
    x3 = jax.random.normal(k5, (50, 128), dtype=jnp.float32)
    t3 = jax.random.randint(k6, (50,), 0, 128, dtype=jnp.int32)
    l3 = label_smoothing_loss(x3, t3, block_rows=16)
    jax.block_until_ready(l3)
    assert jnp.allclose(l3, _reference(x3, t3), atol=1e-5, rtol=1e-5), (
        l3, _reference(x3, t3))

    print("KERNEL_OK")
</pallas_src>

<mosaic_0001>
module attributes {stable_mosaic.version = 11 : i64} {
  func.func @_label_smoothing_kernel(%arg0: i32, %arg1: memref<16x128xf32, #tpu.memory_space<vmem>>, %arg2: memref<16x1xi32, #tpu.memory_space<vmem>>, %arg3: memref<1x8x128xf32, #tpu.memory_space<vmem>>) attributes {dimension_semantics = [#tpu.dimension_semantics<parallel>], iteration_bounds = array<i64: 1>, scalar_prefetch = 0 : i64, scratch_operands = 0 : i64, tpu.core_type = #tpu.core_type<tc>, window_params = [{transform_indices = @transform_0, window_bounds = array<i64: 16, 128>}, {transform_indices = @transform_1, window_bounds = array<i64: 16, 1>}, {transform_indices = @transform_2, window_bounds = array<i64: 1, 8, 128>}]} {
    %c0 = arith.constant 0 : index
    %c0_0 = arith.constant 0 : index
    %0 = vector.load %arg1[%c0, %c0_0] : memref<16x128xf32, #tpu.memory_space<vmem>>, vector<16x128xf32>
    %cst = arith.constant dense<0xFF800000> : vector<16xf32>
    %1 = vector.multi_reduction <maximumf>, %0, %cst [1] : vector<16x128xf32> to vector<16xf32>
    %2 = vector.shape_cast %1 : vector<16xf32> to vector<16x1xf32>
    %3 = vector.broadcast %2 : vector<16x1xf32> to vector<16x128xf32>
    %4 = arith.subf %0, %3 : vector<16x128xf32>
    %5 = math.exp %4 : vector<16x128xf32>
    %cst_1 = arith.constant dense<0.000000e+00> : vector<16xf32>
    %6 = vector.multi_reduction <add>, %5, %cst_1 [1] : vector<16x128xf32> to vector<16xf32>
    %7 = vector.shape_cast %6 : vector<16xf32> to vector<16x1xf32>
    %8 = math.log %7 : vector<16x1xf32>
    %c0_2 = arith.constant 0 : index
    %c0_3 = arith.constant 0 : index
    %9 = vector.load %arg2[%c0_2, %c0_3] : memref<16x1xi32, #tpu.memory_space<vmem>>, vector<16x1xi32>
    %10 = tpu.iota {dimensions = array<i32: 1>} : vector<16x128xi32>
    %11 = vector.broadcast %9 : vector<16x1xi32> to vector<16x128xi32>
    %12 = arith.cmpi eq, %10, %11 : vector<16x128xi32>
    %cst_4 = arith.constant 0.900781273 : f32
    %cst_5 = arith.constant 7.812500e-04 : f32
    %13 = vector.broadcast %cst_4 : f32 to vector<16x128xf32>
    %14 = vector.broadcast %cst_5 : f32 to vector<16x128xf32>
    %15 = arith.select %12, %13, %14 : vector<16x128xi1>, vector<16x128xf32>
    %16 = arith.mulf %0, %15 : vector<16x128xf32>
    %cst_6 = arith.constant dense<0.000000e+00> : vector<16xf32>
    %17 = vector.multi_reduction <add>, %16, %cst_6 [1] : vector<16x128xf32> to vector<16xf32>
    %18 = vector.shape_cast %17 : vector<16xf32> to vector<16x1xf32>
    %19 = arith.addf %2, %8 : vector<16x1xf32>
    %20 = arith.subf %19, %18 : vector<16x1xf32>
    %c16_i32 = arith.constant 16 : i32
    %21 = arith.muli %arg0, %c16_i32 : i32
    %22 = tpu.iota {dimensions = array<i32: 0>} : vector<16x1xi32>
    %23 = vector.broadcast %21 : i32 to vector<16x1xi32>
    %24 = arith.addi %23, %22 : vector<16x1xi32>
    %c16_i32_7 = arith.constant 16 : i32
    %25 = vector.broadcast %c16_i32_7 : i32 to vector<16x1xi32>
    %26 = arith.cmpi slt, %24, %25 : vector<16x1xi32>
    %cst_8 = arith.constant 0.000000e+00 : f32
    %27 = vector.broadcast %cst_8 : f32 to vector<16x1xf32>
    %28 = arith.select %26, %20, %27 : vector<16x1xi1>, vector<16x1xf32>
    %29 = vector.shape_cast %28 : vector<16x1xf32> to vector<1x16x1xf32>
    %cst_9 = arith.constant dense<0.000000e+00> : vector<1xf32>
    %30 = vector.multi_reduction <add>, %29, %cst_9 [1, 2] : vector<1x16x1xf32> to vector<1xf32>
    %31 = vector.shape_cast %30 : vector<1xf32> to vector<1x1x1xf32>
    %32 = vector.extract %31[0, 0, 0] : f32 from vector<1x1x1xf32>
    %33 = vector.broadcast %32 : f32 to vector<1x8x128xf32>
    %c0_10 = arith.constant 0 : index
    %c0_11 = arith.constant 0 : index
    %c0_12 = arith.constant 0 : index
    %34 = vector.load %arg3[%c0_10, %c0_11, %c0_12] : memref<1x8x128xf32, #tpu.memory_space<vmem>>, vector<1x8x128xf32>
    tpu.vector_store %arg3[%c0_10, %c0_11, %c0_12], %33 {strides = array<i32>} : memref<1x8x128xf32, #tpu.memory_space<vmem>>, vector<1x8x128xf32>,
    return
  }
  func.func @transform_0(%arg0: i32) -> (i32, i32) {
    %c0_i32 = arith.constant 0 : i32
    %c0_i32_0 = arith.constant 0 : i32
    return %arg0, %c0_i32 : i32, i32
  }
  func.func @transform_1(%arg0: i32) -> (i32, i32) {
    %c0_i32 = arith.constant 0 : i32
    %c0_i32_0 = arith.constant 0 : i32
    return %arg0, %c0_i32 : i32, i32
  }
  func.func @transform_2(%arg0: i32) -> (i32, i32, i32) {
    %c0_i32 = arith.constant 0 : i32
    %c0_i32_0 = arith.constant 0 : i32
    %c0_i32_1 = arith.constant 0 : i32
    return %arg0, %c0_i32, %c0_i32_0 : i32, i32, i32
  }
}

</mosaic_0001>

<llo_original>
// kernel: tpu_custom_call.1
$region0: #{tpu_custom_call.1}
  #allocation0 [shape = 'u32[]', space=smem, size = 0x4, offset = 0x4, fixed_abs, tag = 'smem constant byte address 0x4 - core index']
  #allocation1 [shape = 'u32[144,128]{1,0:T(1,128)}', space=vmem, size = 0x12000, scoped, tag = 'internal scratch']
  %s0 = inlined_call_operand.vmem [shape: f32[16,128], index: 0, kind: input, shape index: {}]
  %s1 = inlined_call_operand.vmem [shape: s32[16,1], index: 1, kind: input, shape index: {}]
  %s2 = inlined_call_operand.hbm [shape: f32[1,8,128], index: 2, kind: output, shape index: {}]
  %s3 = sld [smem:[#allocation0]]
  $region18: #{tpu_custom_call.1} parent=0
    _
  %s5 = ssub.s32 1, %s3
  %s6 = scalar_select 0, %s5, %s3
  $region1: #{tpu_custom_call.1} parent=0
    #allocation2 [shape = 'u8[4096]{0}', space=vmem, size = 0x1000, scoped, tag = 'output window, operand 0, single buffered']
    #allocation3 [shape = 's32[1]{0}', space=sflag, size = 0x4, scoped, tag = 'scoped memory for tpu_custom_call.1']
    %7 = vsyncpa [#allocation3], 0
    // Predicated region
    $region2: #{tpu_custom_call.1} parent=1 // pred_check
      _
    $region3: #{tpu_custom_call.1} parent=1 // pred_check_branch
      %9 = sbr.rel (0) target = $region5
    $region4: #{tpu_custom_call.1} parent=1 // pred_region
      _
    $region5: #{tpu_custom_call.1} parent=1 // pred_fallthru
      _
    // Predicated region
    $region6: #{tpu_custom_call.1} parent=1 // pred_check
      _
    $region7: #{tpu_custom_call.1} parent=1 // pred_check_branch
      %11 = sbr.rel (0) target = $region9
    $region8: #{tpu_custom_call.1} parent=1 // pred_region
      _
    $region9: #{tpu_custom_call.1} parent=1 // pred_fallthru
      _
    %v12 = vld [vmem:[%s0] sm:$0xff]
    %v13 = vld [vmem:[%s0 + $0x8] sm:$0xff]
    %14 = vmax.xlane.f32.xlu0 %v12
    %v15 = vpop.xlane.xlu0 %14
    %16 = vmax.xlane.f32.xlu0 %v13
    %v17 = vpop.xlane.xlu0 %16
    %v18 = vsub.f32 %v12, %v15
    %v19 = vsub.f32 %v13, %v17
    %v20 = vmul.f32 %v18, 1.442695
    %v21 = vpow.pop %v20
    %v22 = vmul.f32 %v19, 1.442695
    %v23 = vpow.pop %v22
    %24 = vadd.xlane.f32.xlu0 %v21
    %v25 = vpop.xlane.xlu0 %24
    %26 = vadd.xlane.f32.xlu0 %v23
    %v27 = vpop.xlane.xlu0 %26
    %v28 = vlog2.pop %v25
    %v29 = vmul.f32 %v28, 0.6931472
    %v30 = vlog2.pop %v27
    %v31 = vmul.f32 %v30, 0.6931472
    %v32 = vld [vmem:[%s1] sm:$0xff]
    %v33 = vld [vmem:[%s1 + $0x8] sm:$0xff]
    %v34 = vlaneseq
    %v35 = vand.u32 %v34, 127
    %36 = vset.pattern.permute.xlu0 0
    %37 = vperm.xlu0 %36, %v32
    %v38 = vpop.permute.xlu0 %37
    %39 = vset.pattern.permute.xlu0 0
    %40 = vperm.xlu0 %39, %v33
    %v41 = vpop.permute.xlu0 %40
    %vm42 = vcmp.eq.s32.totalorder %v35, %v38
    %vm43 = vcmp.eq.s32.totalorder %v35, %v41
    %v44 = vsel %vm42, 0.9007813, 0.00078125
    %v45 = vsel %vm43, 0.9007813, 0.00078125
    %v46 = vmul.f32 %v12, %v44
    %v47 = vmul.f32 %v13, %v45
    %48 = vadd.xlane.f32.xlu0 %v46
    %v49 = vpop.xlane.xlu0 %48
    %50 = vadd.xlane.f32.xlu0 %v47
    %v51 = vpop.xlane.xlu0 %50
    %v52 = vadd.f32 %v15, %v29
    %v53 = vadd.f32 %v17, %v31
    %v54 = vsub.f32 %v52, %v49
    %v55 = vsub.f32 %v53, %v51
    %s56 = smul.u32 0, 16
    %v57 = vlaneseq
    %v58 = vshrl.u32 %v57, 7
    %v59 = vadd.s32 %v58, 8
    %v60 = vstv %s56
    %v61 = vadd.s32 %v60, %v58
    %v62 = vadd.s32 %v60, %v59
    %vm63 = vcmp.lt.s32.totalorder %v61, 16
    %vm64 = vcmp.lt.s32.totalorder %v62, 16
    %v65 = vsel %vm63, %v54, 0.0
    %v66 = vsel %vm64, %v55, 0.0
    %vm67 = vcmask 7168
    %v68 = vsel %vm67, %v65, 0.0
    %v69 = vsel %vm67, %v66, 0.0
    %v70 = vadd.f32 %v68, %v69
    %71 = vadd.xlane.f32.xlu0 %v70
    %v72 = vpop.xlane.xlu0 %71
    %v73 = vrot.slane %v72, 4
    %v74 = vadd.f32 %v72, %v73
    %v75 = vrot.slane %v74, 2
    %v76 = vadd.f32 %v74, %v75
    %v77 = vrot.slane %v76, 1
    %v78 = vadd.f32 %v76, %v77
    %s79 = vtos %v78
    %v80 = vstv %s79
    %81 = vst [vmem:[#allocation2] sm:$0xff] %v80
    // Predicated region
    $region10: #{tpu_custom_call.1} parent=1 // pred_check
      _
    $region11: #{tpu_custom_call.1} parent=1 // pred_check_branch
      %83 = sbr.rel (0) target = $region13
    $region12: #{tpu_custom_call.1} parent=1 // pred_region
      %s85 = ssub.s32 128, 128
      %86 = vsyncadd [#allocation3], %s85
      %s88 = sshll.u32 [#allocation2], 4
      %s89 = int_to_ptr.vmem [resolvable:$true] %s88
      %91 = dma.vmem_to_hbm [thread:$0]  %s89, 128, %s2, [#allocation3]
    $region13: #{tpu_custom_call.1} parent=1 // pred_fallthru
      _
    // Predicated region
    $region14: #{tpu_custom_call.1} parent=1 // pred_check
      _
    $region15: #{tpu_custom_call.1} parent=1 // pred_check_branch
      %93 = sbr.rel (0) target = $region17
    $region16: #{tpu_custom_call.1} parent=1 // pred_region
      %94 = dma.done [#allocation3], 128
    $region17: #{tpu_custom_call.1} parent=1 // pred_fallthru
      _
    %95 = vsyncpa [#allocation3], 1

</llo_original>
